<compile_context>
chip_gen: v6e
topology: v6e:2x2x1
jax: 0.10.0
libtpu: 0.0.40
codegen_flags: <defaults>
</compile_context>

<pallas_src>
import math
from functools import partial

import jax
import jax.numpy as jnp
from jax import lax
from jax.experimental import pallas as pl
from jax.experimental.pallas import tpu as pltpu


# ----------------------------------------------------------------------------
# ALiBi slopes (identical math to _get_alibi_slopes in the PyTorch module)
# ----------------------------------------------------------------------------
def get_alibi_slopes(total_num_heads: int) -> jnp.ndarray:
    closest_power_of_2 = 2 ** math.floor(math.log2(total_num_heads))
    base = 2 ** (-(2 ** (-(math.log2(closest_power_of_2) - 3))))
    powers = jnp.arange(1, 1 + closest_power_of_2, dtype=jnp.float32)
    slopes = jnp.power(jnp.float32(base), powers)
    if closest_power_of_2 != total_num_heads:
        extra_base = 2 ** (-(2 ** (-(math.log2(2 * closest_power_of_2) - 3))))
        num_remaining = min(closest_power_of_2,
                            total_num_heads - closest_power_of_2)
        extra_powers = jnp.arange(1, 1 + 2 * num_remaining, 2,
                                  dtype=jnp.float32)
        slopes = jnp.concatenate(
            [slopes, jnp.power(jnp.float32(extra_base), extra_powers)], axis=0)
    return slopes.astype(jnp.float32)


# ----------------------------------------------------------------------------
# Helpers
# ----------------------------------------------------------------------------
def _pick_tile(dim: int, target: int, align: int) -> int:
    """Largest tile <= target that divides `dim` and is a multiple of `align`.
    Falls back to the full dim (a full-extent block always satisfies Mosaic's
    (8,128) tiling rule)."""
    if dim <= target:
        return dim
    t = (target // align) * align
    while t >= align:
        if dim % t == 0:
            return t
        t -= align
    return dim


def _vmem_limit(working_set_bytes: int) -> int:
    """Scoped-VMEM limit: working set + headroom, clamped to a range that is
    safe on every generation (v7x has only 64 MiB physical VMEM per TC)."""
    return int(min(max(2 * working_set_bytes + (16 << 20), 32 << 20), 64 << 20))


# ----------------------------------------------------------------------------
# Tiled linear:  y = x @ w + b
# ----------------------------------------------------------------------------
def _linear_kernel(x_ref, w_ref, b_ref, o_ref, acc_ref):
    @pl.when(pl.program_id(2) == 0)
    def _init():
        acc_ref[...] = jnp.zeros_like(acc_ref)

    # bf16 operands, f32 accumulation on the MXU.
    acc_ref[...] += jnp.dot(x_ref[...], w_ref[...],
                            preferred_element_type=jnp.float32)

    @pl.when(pl.program_id(2) == pl.num_programs(2) - 1)
    def _finalize():
        o_ref[...] = (acc_ref[...] + b_ref[...]).astype(o_ref.dtype)


def linear(x, w, b, out_dtype=None, tm=512, tn=1024, tk=512):
    """x: [S, In] (bf16 preferred), w: [In, Out] (bf16 preferred), b: [Out] f32.

    Large tiles cut the S/tm weight re-reads and Out/tn activation re-reads
    that dominate HBM traffic on v5e/v6e; the VMEM budget is derived from the
    tiles and capped so it also fits v7x's 64 MiB VMEM.
    """
    S, In = x.shape
    In2, Out = w.shape
    assert In == In2, (In, In2)
    out_dtype = out_dtype if out_dtype is not None else x.dtype

    tm = _pick_tile(S, tm, 16)       # 16-row alignment (bf16 packs 2 rows/sublane)
    tn = _pick_tile(Out, tn, 128)    # lane-aligned output tile
    tk = _pick_tile(In, tk, 128)     # lane-aligned reduction tile
    grid = (S // tm, Out // tn, In // tk)

    b2 = b.reshape(1, Out).astype(jnp.float32)

    xb = jnp.dtype(x.dtype).itemsize
    wb = jnp.dtype(w.dtype).itemsize
    ob = jnp.dtype(out_dtype).itemsize
    working = (2 * (tm * tk * xb + tk * tn * wb + tm * tn * ob)
               + tm * tn * 4 + 2 * tn * 4)

    cost = pl.CostEstimate(
        flops=int(2 * S * In * Out),
        transcendentals=0,
        bytes_accessed=int(S * In * xb * (Out // tn)
                           + In * Out * wb * (S // tm)
                           + S * Out * ob + Out * 4),
    )

    return pl.pallas_call(
        _linear_kernel,
        out_shape=jax.ShapeDtypeStruct((S, Out), out_dtype),
        grid_spec=pltpu.PrefetchScalarGridSpec(
            num_scalar_prefetch=0,
            grid=grid,
            in_specs=[
                pl.BlockSpec((tm, tk), lambda i, j, k: (i, k)),
                pl.BlockSpec((tk, tn), lambda i, j, k: (k, j)),
                pl.BlockSpec((1, tn), lambda i, j, k: (0, j)),
            ],
            out_specs=pl.BlockSpec((tm, tn), lambda i, j, k: (i, j)),
            scratch_shapes=[pltpu.VMEM((tm, tn), jnp.float32)],
        ),
        compiler_params=pltpu.CompilerParams(
            dimension_semantics=("parallel", "parallel", "arbitrary"),
            vmem_limit_bytes=_vmem_limit(working),
        ),
        cost_estimate=cost,
    )(x, w, b2)


# ----------------------------------------------------------------------------
# Flash-style causal attention with ALiBi (online softmax over KV blocks)
# ----------------------------------------------------------------------------
def _flash_alibi_kernel(slopes_ref, q_ref, k_ref, v_ref, o_ref,
                        m_sc, l_sc, acc_sc,
                        *, group, head_dim, blk_q, blk_kv, kv_ratio):
    g = pl.program_id(0)      # head group
    qi = pl.program_id(1)     # query block
    ki = pl.program_id(2)     # kv block (reduction axis)
    G, hd = group, head_dim
    tq, tkv, r = blk_q, blk_kv, kv_ratio

    @pl.when(ki == 0)
    def _init():
        m_sc[...] = jnp.full_like(m_sc, -jnp.inf)
        l_sc[...] = jnp.zeros_like(l_sc)
        acc_sc[...] = jnp.zeros_like(acc_sc)

    def compute(masked):
        kv_start = ki * tkv
        # ALiBi folded: softmax is shift-invariant per row, so
        # slope * (j - i)  ==  slope * j   -> one (1, tkv) bias row.
        colv = (lax.broadcasted_iota(jnp.int32, (1, tkv), 1)
                + kv_start).astype(jnp.float32)
        if masked:
            # Causal mask needed only on the diagonal band of blocks.
            q_start = qi * tq
            row = lax.broadcasted_iota(jnp.int32, (tq, tkv), 0) + q_start
            col = lax.broadcasted_iota(jnp.int32, (tq, tkv), 1) + kv_start
            causal = col <= row

        for hh in range(G):                     # static unroll over grouped heads
            sl = slopes_ref[g * G + hh]         # f32 scalar from SMEM
            qh = q_ref[:, hh * hd:(hh + 1) * hd]    # scale already folded into Wq
            kh = k_ref[:, hh * hd:(hh + 1) * hd]
            vh = v_ref[:, hh * hd:(hh + 1) * hd]

            # q @ k^T without materializing a transpose (contract last axes).
            s = lax.dot_general(qh, kh, (((1,), (1,)), ((), ())),
                                preferred_element_type=jnp.float32)
            s = s + sl * colv
            if masked:
                s = jnp.where(causal, s, -1e30)     # keep in f32 (no -inf in bf16)

            m_prev = m_sc[hh]                                        # (tq, 1)
            m_new = jnp.maximum(m_prev, jnp.max(s, axis=-1, keepdims=True))
            alpha = jnp.exp(m_prev - m_new)
            p = jnp.exp(s - m_new)
            l_sc[hh] = alpha * l_sc[hh] + jnp.sum(p, axis=-1, keepdims=True)
            acc_sc[hh] = alpha * acc_sc[hh] + lax.dot_general(
                p.astype(jnp.bfloat16), vh, (((1,), (0,)), ((), ())),
                preferred_element_type=jnp.float32)
            m_sc[hh] = m_new

    # Fully-below-diagonal KV blocks: no iota / compare / select on the VALU.
    @pl.when(ki < qi * r)
    def _full():
        compute(masked=False)

    # Diagonal band: apply the causal mask. Blocks strictly above the diagonal
    # (ki >= (qi+1)*r) are skipped entirely; their DMA is elided by the min()
    # remapping in the k/v index_map.
    @pl.when(jnp.logical_and(ki >= qi * r, ki < (qi + 1) * r))
    def _diag():
        compute(masked=True)

    @pl.when(ki == pl.num_programs(2) - 1)
    def _finalize():
        outs = []
        for hh in range(G):
            inv = pl.reciprocal(l_sc[hh], approx=True)   # EUP slot, ~free
            outs.append(acc_sc[hh] * inv)                # (tq, hd) f32
        out = outs[0] if G == 1 else jnp.concatenate(outs, axis=1)
        o_ref[...] = out.astype(o_ref.dtype)


def flash_alibi_attention(qkv, slopes, num_heads, head_dim,
                          block_q=512, block_kv=256, max_group=8):
    """qkv: [S, 3H] packed (q | k | v), heads laid out as contiguous column
    groups inside each third. Output: [S, H].

    When the head-group width G*hd is a multiple of 128 lanes, the q/k/v thirds
    are addressed directly as column blocks of the packed tensor (no split
    copy). Otherwise (tiny head dims) the thirds are split so every block is a
    full-extent last dim, as required by Mosaic's tiling rule.
    """
    S, threeH = qkv.shape
    H = threeH // 3
    nh, hd = num_heads, head_dim
    assert H == nh * hd and threeH == 3 * H

    # Head-group size G: prefer a lane-dense (multiple-of-128, <=512 wide)
    # grouping, capped to bound the static unroll; else fall back to the whole
    # per-tensor hidden dim (full-extent block, only hit for tiny head dims).
    G = None
    for cand in range(min(nh, max_group), 0, -1):
        if nh % cand == 0 and (cand * hd) % 128 == 0 and cand * hd <= 512:
            G = cand
            break
    if G is None:
        for cand in range(1, nh + 1):
            if nh % cand == 0 and (cand * hd) % 128 == 0:
                G = cand
                break
    if G is None:
        G = nh          # tiny head_dim: one group spanning the whole H columns
    ghd = G * hd
    nhg = nh // G

    # Decoupled q / kv tiles: bigger q tile halves KV HBM re-reads; tkv divides
    # tq so the causal band logic stays exact. 16-row alignment for bf16.
    tq = _pick_tile(S, block_q, 16)
    tkv = _pick_tile(tq, min(block_kv, tq), 16)
    r = tq // tkv
    nq = S // tq
    nkv = S // tkv
    grid = (nhg, nq, nkv)         # (head group, q block, kv block)

    packed = (ghd % 128 == 0)
    if packed:
        # Index the packed qkv directly -> no split copy through HBM.
        a_q = a_k = a_v = qkv
        q_base, k_base, v_base = 0, nhg, 2 * nhg
    else:
        # Small widths: a ghd-wide column block of [S,3H] would violate the
        # (8,128)/full-extent block rule, so split (tiny copies at these sizes).
        a_q, a_k, a_v = jnp.split(qkv, 3, axis=-1)
        q_base = k_base = v_base = 0

    slopes = slopes.astype(jnp.float32).reshape(nh)

    itm = jnp.dtype(qkv.dtype).itemsize
    working = (2 * (2 * tq * ghd + 2 * tkv * ghd) * itm
               + G * tq * (hd + 2) * 4)

    cost = pl.CostEstimate(
        flops=int(2 * nh * S * S * hd),            # causal-halved qk^T + p@v
        transcendentals=int(nh * S * S // 2),
        bytes_accessed=int(2 * S * H * itm * (1 + S // tq) + 2 * S * H * itm
                           + nh * 4),
    )

    kernel = partial(_flash_alibi_kernel, group=G, head_dim=hd,
                     blk_q=tq, blk_kv=tkv, kv_ratio=r)

    return pl.pallas_call(
        kernel,
        out_shape=jax.ShapeDtypeStruct((S, H), qkv.dtype),
        grid_spec=pltpu.PrefetchScalarGridSpec(
            num_scalar_prefetch=0,
            grid=grid,
            in_specs=[
                # ALiBi slopes: tiny table, whole array in SMEM.
                pl.BlockSpec(memory_space=pltpu.MemorySpace.SMEM),
                pl.BlockSpec((tq, ghd),
                             lambda g, qi, ki: (qi, q_base + g)),            # q
                # kv blocks above the causal band are remapped onto the last
                # diagonal block -> no DMA is issued for skipped iterations.
                pl.BlockSpec((tkv, ghd),
                             lambda g, qi, ki: (jnp.minimum(ki, (qi + 1) * r - 1),
                                                k_base + g)),                # k
                pl.BlockSpec((tkv, ghd),
                             lambda g, qi, ki: (jnp.minimum(ki, (qi + 1) * r - 1),
                                                v_base + g)),                # v
            ],
            out_specs=pl.BlockSpec((tq, ghd), lambda g, qi, ki: (qi, g)),
            scratch_shapes=[
                pltpu.VMEM((G, tq, 1), jnp.float32),    # running max
                pltpu.VMEM((G, tq, 1), jnp.float32),    # running sum
                pltpu.VMEM((G, tq, hd), jnp.float32),   # output accumulator
            ],
        ),
        compiler_params=pltpu.CompilerParams(
            dimension_semantics=("parallel", "parallel", "arbitrary"),
            vmem_limit_bytes=_vmem_limit(working),
        ),
        cost_estimate=cost,
    )(slopes, a_q, a_k, a_v)


# ----------------------------------------------------------------------------
# JAISAttention forward (glue in plain JAX, hot paths in Pallas)
# ----------------------------------------------------------------------------
class JAISAttentionPallas:
    def __init__(self, hidden_size, num_attention_heads, key,
                 attn_block_q=512, attn_block_kv=256):
        self.hidden_size = hidden_size
        self.num_heads = num_attention_heads
        self.head_dim = hidden_size // num_attention_heads
        self.scale = self.head_dim ** (-1.0)   # JAIS uses 1/head_dim (not rsqrt)
        self.attn_block_q = attn_block_q
        self.attn_block_kv = attn_block_kv

        k1, k2, k3, k4 = jax.random.split(key, 4)
        s = 0.02
        self.w_attn = (jax.random.normal(k1, (hidden_size, 3 * hidden_size),
                                         jnp.float32) * s)
        self.b_attn = (jax.random.normal(k2, (3 * hidden_size,),
                                         jnp.float32) * s)
        self.w_proj = (jax.random.normal(k3, (hidden_size, hidden_size),
                                         jnp.float32) * s)
        self.b_proj = (jax.random.normal(k4, (hidden_size,),
                                         jnp.float32) * s)

        # bf16 copies for the MXU (halves weight DMA bytes, doubles MXU rate);
        # accumulation stays f32 inside the kernels. The 1/head_dim attention
        # scale is folded into the Q third of Wqkv / bqkv (one-time transform,
        # removes a per-step VALU multiply from the attention inner loop).
        w_attn_folded = self.w_attn.at[:, :hidden_size].multiply(self.scale)
        self.w_attn_bf = w_attn_folded.astype(jnp.bfloat16)
        self.b_attn_folded = self.b_attn.at[:hidden_size].multiply(self.scale)
        self.w_proj_bf = self.w_proj.astype(jnp.bfloat16)
        self.alibi_slopes = get_alibi_slopes(num_attention_heads)

    def __call__(self, hidden_states):
        # hidden_states: [S, H]
        in_dtype = hidden_states.dtype
        x16 = hidden_states.astype(jnp.bfloat16)

        # c_attn (ColumnParallelLinear): [S, H] -> [S, 3H] (Q pre-scaled)
        qkv = linear(x16, self.w_attn_bf, self.b_attn_folded,
                     out_dtype=jnp.bfloat16)

        # Attention consumes the packed qkv directly (column-offset BlockSpecs
        # select q/k/v and head groups; no [S,3H] split copy at model sizes).
        attn = flash_alibi_attention(qkv, self.alibi_slopes,
                                     self.num_heads, self.head_dim,
                                     block_q=self.attn_block_q,
                                     block_kv=self.attn_block_kv)

        # c_proj (RowParallelLinear, bias=True): [S, H] -> [S, H]
        return linear(attn, self.w_proj_bf, self.b_proj, out_dtype=in_dtype)


# ----------------------------------------------------------------------------
# Pure-JAX f32 reference for a sanity check
# ----------------------------------------------------------------------------
def reference_forward(mod: JAISAttentionPallas, hidden_states):
    S, H = hidden_states.shape
    nh, hd = mod.num_heads, mod.head_dim
    qkv = hidden_states @ mod.w_attn + mod.b_attn
    q, k, v = jnp.split(qkv, 3, axis=-1)
    q = jnp.transpose(q.reshape(S, nh, hd), (1, 0, 2))
    k = jnp.transpose(k.reshape(S, nh, hd), (1, 0, 2))
    v = jnp.transpose(v.reshape(S, nh, hd), (1, 0, 2))
    scores = jnp.einsum("hqd,hkd->hqk", q, k) * mod.scale
    i = jnp.arange(S)[:, None]
    j = jnp.arange(S)[None, :]
    bias = mod.alibi_slopes[:, None, None] * (j - i)[None].astype(jnp.float32)
    scores = scores + bias
    scores = jnp.where((j <= i)[None], scores, -1e30)
    p = jax.nn.softmax(scores, axis=-1)
    out = jnp.einsum("hqk,hkd->hqd", p, v)
    out = jnp.transpose(out, (1, 0, 2)).reshape(S, H)
    return out @ mod.w_proj + mod.b_proj


if __name__ == "__main__":
    key = jax.random.PRNGKey(0)
    k_param, k_x = jax.random.split(key)

    hidden_size = 32
    num_heads = 4          # head_dim = 8
    seq_len = 64           # block_q=32 / block_kv=16 -> exercises the decoupled
                           # tq!=tkv path, full (unmasked) blocks, the masked
                           # diagonal band and the causal block-skip/DMA-elide.

    mod = JAISAttentionPallas(hidden_size, num_heads, k_param,
                              attn_block_q=32, attn_block_kv=16)
    hidden_states = jax.random.normal(k_x, (seq_len, hidden_size), jnp.float32)

    out = jax.block_until_ready(mod(hidden_states))
    ref = reference_forward(mod, hidden_states)

    assert out.shape == (seq_len, hidden_size)
    assert out.dtype == hidden_states.dtype
    # bf16 MXU operands + approx reciprocal -> compare at bf16-level tolerance.
    err = float(jnp.max(jnp.abs(out - ref)))
    assert jnp.allclose(out, ref, atol=2e-2, rtol=2e-2), \
        f"mismatch vs reference (max abs err {err:.3e})"

    print("KERNEL_OK")
</pallas_src>

<mosaic_0001>
module attributes {stable_mosaic.version = 11 : i64} {
  func.func @_linear_kernel(%arg0: i32, %arg1: i32, %arg2: i32, %arg3: memref<64x32xbf16, #tpu.memory_space<vmem>>, %arg4: memref<32x96xbf16, #tpu.memory_space<vmem>>, %arg5: memref<1x96xf32, #tpu.memory_space<vmem>>, %arg6: memref<64x96xbf16, #tpu.memory_space<vmem>>, %arg7: memref<64x96xf32, #tpu.memory_space<vmem>>) attributes {dimension_semantics = [#tpu.dimension_semantics<parallel>, #tpu.dimension_semantics<parallel>, #tpu.dimension_semantics<arbitrary>], iteration_bounds = array<i64: 1, 1, 1>, scalar_prefetch = 0 : i64, scratch_operands = 1 : i64, tpu.core_type = #tpu.core_type<tc>, window_params = [{transform_indices = @transform_0, window_bounds = array<i64: 64, 32>}, {transform_indices = @transform_1, window_bounds = array<i64: 32, 96>}, {transform_indices = @transform_2, window_bounds = array<i64: 1, 96>}, {transform_indices = @transform_3, window_bounds = array<i64: 64, 96>}]} {
    %c0_i32 = arith.constant 0 : i32
    %0 = arith.cmpi eq, %arg2, %c0_i32 : i32
    %1 = arith.extui %0 : i1 to i32
    %c0_i32_0 = arith.constant 0 : i32
    %2 = arith.cmpi ne, %1, %c0_i32_0 : i32
    scf.if %2 {
      %cst_10 = arith.constant 0.000000e+00 : f32
      %12 = vector.broadcast %cst_10 : f32 to vector<64x96xf32>
      %c0_11 = arith.constant 0 : index
      %c0_12 = arith.constant 0 : index
      %13 = vector.load %arg7[%c0_11, %c0_12] : memref<64x96xf32, #tpu.memory_space<vmem>>, vector<64x96xf32>
      tpu.vector_store %arg7[%c0_11, %c0_12], %12 {strides = array<i32>} : memref<64x96xf32, #tpu.memory_space<vmem>>, vector<64x96xf32>,
    } else {
    }
    %c0 = arith.constant 0 : index
    %c0_1 = arith.constant 0 : index
    %3 = vector.load %arg7[%c0, %c0_1] : memref<64x96xf32, #tpu.memory_space<vmem>>, vector<64x96xf32>
    %c0_2 = arith.constant 0 : index
    %c0_3 = arith.constant 0 : index
    %4 = vector.load %arg3[%c0_2, %c0_3] : memref<64x32xbf16, #tpu.memory_space<vmem>>, vector<64x32xbf16>
    %c0_4 = arith.constant 0 : index
    %c0_5 = arith.constant 0 : index
    %5 = vector.load %arg4[%c0_4, %c0_5] : memref<32x96xbf16, #tpu.memory_space<vmem>>, vector<32x96xbf16>
    %cst = arith.constant dense<0.000000e+00> : vector<64x96xf32>
    %6 = tpu.matmul %4, %5, %cst {dimension_numbers = #tpu.dot_dimension_numbers<[1], [0], [0], [1], [0, 0, 1, 1], [], []>} : vector<64x32xbf16>, vector<32x96xbf16>, vector<64x96xf32> -> vector<64x96xf32>
    %7 = arith.addf %3, %6 : vector<64x96xf32>
    %c0_6 = arith.constant 0 : index
    %c0_7 = arith.constant 0 : index
    %8 = vector.load %arg7[%c0_6, %c0_7] : memref<64x96xf32, #tpu.memory_space<vmem>>, vector<64x96xf32>
    tpu.vector_store %arg7[%c0_6, %c0_7], %7 {strides = array<i32>} : memref<64x96xf32, #tpu.memory_space<vmem>>, vector<64x96xf32>,
    %c0_i32_8 = arith.constant 0 : i32
    %9 = arith.cmpi eq, %arg2, %c0_i32_8 : i32
    %10 = arith.extui %9 : i1 to i32
    %c0_i32_9 = arith.constant 0 : i32
    %11 = arith.cmpi ne, %10, %c0_i32_9 : i32
    scf.if %11 {
      %c0_10 = arith.constant 0 : index
      %c0_11 = arith.constant 0 : index
      %12 = vector.load %arg7[%c0_10, %c0_11] : memref<64x96xf32, #tpu.memory_space<vmem>>, vector<64x96xf32>
      %c0_12 = arith.constant 0 : index
      %c0_13 = arith.constant 0 : index
      %13 = vector.load %arg5[%c0_12, %c0_13] : memref<1x96xf32, #tpu.memory_space<vmem>>, vector<1x96xf32>
      %14 = vector.broadcast %13 : vector<1x96xf32> to vector<64x96xf32>
      %15 = arith.addf %12, %14 : vector<64x96xf32>
      %16 = arith.truncf %15 : vector<64x96xf32> to vector<64x96xbf16>
      %c0_14 = arith.constant 0 : index
      %c0_15 = arith.constant 0 : index
      %17 = vector.load %arg6[%c0_14, %c0_15] : memref<64x96xbf16, #tpu.memory_space<vmem>>, vector<64x96xbf16>
      tpu.vector_store %arg6[%c0_14, %c0_15], %16 {strides = array<i32>} : memref<64x96xbf16, #tpu.memory_space<vmem>>, vector<64x96xbf16>,
    } else {
    }
    return
  }
  func.func @transform_0(%arg0: i32, %arg1: i32, %arg2: i32) -> (i32, i32) {
    %c0_i32 = arith.constant 0 : i32
    return %arg0, %arg2 : i32, i32
  }
  func.func @transform_1(%arg0: i32, %arg1: i32, %arg2: i32) -> (i32, i32) {
    %c0_i32 = arith.constant 0 : i32
    return %arg2, %arg1 : i32, i32
  }
  func.func @transform_2(%arg0: i32, %arg1: i32, %arg2: i32) -> (i32, i32) {
    %c0_i32 = arith.constant 0 : i32
    %c0_i32_0 = arith.constant 0 : i32
    return %c0_i32, %arg1 : i32, i32
  }
  func.func @transform_3(%arg0: i32, %arg1: i32, %arg2: i32) -> (i32, i32) {
    %c0_i32 = arith.constant 0 : i32
    return %arg0, %arg1 : i32, i32
  }
}

</mosaic_0001>

<llo_original>
// kernel: tpu_custom_call.1
$region0: #{tpu_custom_call.1}
  #allocation0 [shape = 'u32[]', space=smem, size = 0x4, offset = 0x4, fixed_abs, tag = 'smem constant byte address 0x4 - core index']
  #allocation1 [shape = 'u32[144,128]{1,0:T(1,128)}', space=vmem, size = 0x12000, scoped, tag = 'internal scratch']
  #allocation2 [shape = 'f32[64,96]{1,0:T(8,128)}', space=vmem, size = 0x8000, scoped, tag = 'scratch operand']
  %s0 = inlined_call_operand.vmem [shape: bf16[64,32], index: 0, kind: input, shape index: {}]
  %s1 = inlined_call_operand.vmem [shape: bf16[32,96], index: 1, kind: input, shape index: {}]
  %s2 = inlined_call_operand.vmem [shape: f32[1,96], index: 2, kind: input, shape index: {}]
  %s3 = inlined_call_operand.hbm [shape: bf16[64,96], index: 3, kind: output, shape index: {}]
  %s4 = sld [smem:[#allocation0]]
  $region30: #{tpu_custom_call.1} parent=0
    _
  %s6 = ssub.s32 1, %s4
  %s7 = scalar_select 0, %s6, %s4
  $region1: #{tpu_custom_call.1} parent=0
    #allocation3 [shape = 'u8[16384]{0}', space=vmem, size = 0x4000, scoped, tag = 'output window, operand 0, single buffered']
    #allocation4 [shape = 's32[1]{0}', space=sflag, size = 0x4, scoped, tag = 'scoped memory for tpu_custom_call.1']
    %8 = vsyncpa [#allocation4], 0
    // Predicated region
    $region2: #{tpu_custom_call.1} parent=1 // pred_check
      _
    $region3: #{tpu_custom_call.1} parent=1 // pred_check_branch
      %10 = sbr.rel (0) target = $region5
    $region4: #{tpu_custom_call.1} parent=1 // pred_region
      _
    $region5: #{tpu_custom_call.1} parent=1 // pred_fallthru
      _
    // Predicated region
    $region6: #{tpu_custom_call.1} parent=1 // pred_check
      _
    $region7: #{tpu_custom_call.1} parent=1 // pred_check_branch
      %12 = sbr.rel (0) target = $region9
    $region8: #{tpu_custom_call.1} parent=1 // pred_region
      _
    $region9: #{tpu_custom_call.1} parent=1 // pred_fallthru
      _
    // Predicated region
    $region10: #{tpu_custom_call.1} parent=1 // pred_check
      _
    $region11: #{tpu_custom_call.1} parent=1 // pred_check_branch
      %14 = sbr.rel (0) target = $region13
    $region12: #{tpu_custom_call.1} parent=1 // pred_region
      _
    $region13: #{tpu_custom_call.1} parent=1 // pred_fallthru
      _
    %p16 = scmp.eq.s32.totalorder 0, 0
    // Predicated region
    $region14: #{tpu_custom_call.1} parent=1 // pred_check
      %p17 = pneg %p16
    $region15: #{tpu_custom_call.1} parent=1 // pred_check_branch
      %19 = sbr.rel (%p17) target = $region17
    $region16: #{tpu_custom_call.1} parent=1 // pred_region
      %vm20 = vcmask 785408
      %21 = vst.msk [vmem:[#allocation2] sm:$0xff] %vm20, 0.0
      %22 = vst.msk [vmem:[#allocation2 + $0x8] sm:$0xff] %vm20, 0.0
      %23 = vst.msk [vmem:[#allocation2 + $0x10] sm:$0xff] %vm20, 0.0
      %24 = vst.msk [vmem:[#allocation2 + $0x18] sm:$0xff] %vm20, 0.0
      %25 = vst.msk [vmem:[#allocation2 + $0x20] sm:$0xff] %vm20, 0.0
      %26 = vst.msk [vmem:[#allocation2 + $0x28] sm:$0xff] %vm20, 0.0
      %27 = vst.msk [vmem:[#allocation2 + $0x30] sm:$0xff] %vm20, 0.0
      %28 = vst.msk [vmem:[#allocation2 + $0x38] sm:$0xff] %vm20, 0.0
    $region17: #{tpu_custom_call.1} parent=1 // pred_fallthru
      _
    %v29 = vld [vmem:[#allocation2] sm:$0xff]
    %v30 = vld [vmem:[#allocation2 + $0x8] sm:$0xff]
    %v31 = vld [vmem:[#allocation2 + $0x10] sm:$0xff]
    %v32 = vld [vmem:[#allocation2 + $0x18] sm:$0xff]
    %v33 = vld [vmem:[#allocation2 + $0x20] sm:$0xff]
    %v34 = vld [vmem:[#allocation2 + $0x28] sm:$0xff]
    %v35 = vld [vmem:[#allocation2 + $0x30] sm:$0xff]
    %v36 = vld [vmem:[#allocation2 + $0x38] sm:$0xff]
    %v37 = vld [vmem:[%s0] sm:$0xf]
    %v38 = vld [vmem:[%s0 + $0x4] sm:$0xf]
    %v39 = vld [vmem:[%s0 + $0x8] sm:$0xf]
    %v40 = vld [vmem:[%s0 + $0xc] sm:$0xf]
    %v41 = vld [vmem:[%s0 + $0x10] sm:$0xf]
    %v42 = vld [vmem:[%s0 + $0x14] sm:$0xf]
    %v43 = vld [vmem:[%s0 + $0x18] sm:$0xf]
    %v44 = vld [vmem:[%s0 + $0x1c] sm:$0xf]
    %v45 = vld [vmem:[%s1] sm:$0xf]
    %v46 = vld [vmem:[%s1 + $0x4] sm:$0xf]
    %v47 = vld [vmem:[%s1 + $0x8] sm:$0xf]
    %v48 = vld [vmem:[%s1 + $0xc] sm:$0xf]
    %v57 = vunpack.c.l.b16 %v37
    %v58 = vunpack.c.l.b16 %v38
    %v59 = vunpack.c.l.b16 %v39
    %v60 = vunpack.c.l.b16 %v40
    %v61 = vunpack.c.l.b16 %v41
    %v62 = vunpack.c.l.b16 %v42
    %v63 = vunpack.c.l.b16 %v43
    %v64 = vunpack.c.l.b16 %v44
    %v65 = vpack.c.b16 %v58, %v57
    %v66 = vpack.c.b16 %v60, %v59
    %v67 = vpack.c.b16 %v62, %v61
    %v68 = vpack.c.b16 %v64, %v63
    %v73 = vunpack.c.l.b16 %v45
    %v74 = vunpack.c.l.b16 %v46
    %v75 = vunpack.c.l.b16 %v47
    %v76 = vunpack.c.l.b16 %v48
    %v77 = vpack.c.b16 %v74, %v73
    %v78 = vpack.c.b16 %v76, %v75
    %vm81 = vcmask 261120
    %v83 = vsel %vm81, %v65, 0
    %v86 = vsel %vm81, %v66, 0
    %v89 = vsel %vm81, %v67, 0
    %v92 = vsel %vm81, %v68, 0
    %94 = vmatprep.subr.bf16.mxu0 0
    %95 = vmatpush1.bf16.msra.mxu0 0
    %96 = vmatprep.subr.bf16.mxu0 0
    %97 = vmatpush1.bf16.msra.mxu0 0
    %98 = vmatprep.subr.bf16.mxu0 0
    %99 = vmatpush1.bf16.msra.mxu0 0
    %100 = vmatprep.subr.bf16.mxu0 0
    %101 = vmatpush1.bf16.msra.mxu0 0
    %102 = vmatprep.subr.bf16.mxu0 0
    %103 = vmatpush1.bf16.msra.mxu0 0
    %104 = vmatprep.subr.bf16.mxu0 0
    %105 = vmatpush1.bf16.msra.mxu0 0
    %106 = vmatprep.subr.bf16.mxu0 0
    %107 = vmatpush1.bf16.msra.mxu0 %v78
    %108 = vmatprep.subr.bf16.mxu0 0
    %109 = vmatpush1.bf16.msra.mxu0 %v77
    %110 = vmatprep.subr.bf16.mxu0 0
    %111 = vmatpush2.bf16.msra.mxu0 0
    %112 = vmatprep.subr.bf16.mxu0 0
    %113 = vmatpush2.bf16.msra.mxu0 0
    %114 = vmatprep.subr.bf16.mxu0 0
    %115 = vmatpush2.bf16.msra.mxu0 0
    %116 = vmatprep.subr.bf16.mxu0 0
    %117 = vmatpush2.bf16.msra.mxu0 0
    %118 = vmatprep.subr.bf16.mxu0 0
    %119 = vmatpush2.bf16.msra.mxu0 0
    %120 = vmatprep.subr.bf16.mxu0 0
    %121 = vmatpush2.bf16.msra.mxu0 0
    %122 = vmatprep.subr.bf16.mxu0 0
    %123 = vmatpush2.bf16.msra.mxu0 0
    %124 = vmatprep.subr.bf16.mxu0 0
    %125 = vmatpush2.bf16.msra.mxu0 0
    %126 = vmatprep.mubr.bf16.mxu0 0
    %127 = vmatmul.mubr.bf16.gmra.mxu0 %v83
    %v128 = vpop.f32.mrf.mxu0
    %v129 = vadd.f32 0.0, %v128
    %v130 = vpop.f32.mrf.mxu0
    %v131 = vpop.f32.mrf.mxu0
    %v132 = vadd.f32 0.0, %v131
    %v133 = vpop.f32.mrf.mxu0
    %134 = vmatprep.mubr.bf16.mxu0 0
    %135 = vmatmul.mubr.bf16.gmra.mxu0 %v86
    %v136 = vpop.f32.mrf.mxu0
    %v137 = vadd.f32 0.0, %v136
    %v138 = vpop.f32.mrf.mxu0
    %v139 = vpop.f32.mrf.mxu0
    %v140 = vadd.f32 0.0, %v139
    %v141 = vpop.f32.mrf.mxu0
    %142 = vmatprep.mubr.bf16.mxu0 0
    %143 = vmatmul.mubr.bf16.gmra.mxu0 %v89
    %v144 = vpop.f32.mrf.mxu0
    %v145 = vadd.f32 0.0, %v144
    %v146 = vpop.f32.mrf.mxu0
    %v147 = vpop.f32.mrf.mxu0
    %v148 = vadd.f32 0.0, %v147
    %v149 = vpop.f32.mrf.mxu0
    %150 = vmatprep.mubr.bf16.mxu0 0
    %151 = vmatmul.mubr.bf16.gmra.mxu0 %v92
    %v152 = vpop.f32.mrf.mxu0
    %v153 = vadd.f32 0.0, %v152
    %v154 = vpop.f32.mrf.mxu0
    %v155 = vpop.f32.mrf.mxu0
    %v156 = vadd.f32 0.0, %v155
    %v157 = vpop.f32.mrf.mxu0
    %158 = vdwg.mxu0
    %v159 = vadd.f32 %v29, %v129
    %v160 = vadd.f32 %v30, %v132
    %v161 = vadd.f32 %v31, %v137
    %v162 = vadd.f32 %v32, %v140
    %v163 = vadd.f32 %v33, %v145
    %v164 = vadd.f32 %v34, %v148
    %v165 = vadd.f32 %v35, %v153
    %v166 = vadd.f32 %v36, %v156
    %vm167 = vcmask 785408
    %168 = vst.msk [vmem:[#allocation2] sm:$0xff] %vm167, %v159
    %169 = vst.msk [vmem:[#allocation2 + $0x8] sm:$0xff] %vm167, %v160
    %170 = vst.msk [vmem:[#allocation2 + $0x10] sm:$0xff] %vm167, %v161
    %171 = vst.msk [vmem:[#allocation2 + $0x18] sm:$0xff] %vm167, %v162
    %172 = vst.msk [vmem:[#allocation2 + $0x20] sm:$0xff] %vm167, %v163
    %173 = vst.msk [vmem:[#allocation2 + $0x28] sm:$0xff] %vm167, %v164
    %174 = vst.msk [vmem:[#allocation2 + $0x30] sm:$0xff] %vm167, %v165
    %175 = vst.msk [vmem:[#allocation2 + $0x38] sm:$0xff] %vm167, %v166
    // Predicated region
    $region18: #{tpu_custom_call.1} parent=1 // pred_check
      %p176 = pneg %p16
    $region19: #{tpu_custom_call.1} parent=1 // pred_check_branch
      %178 = sbr.rel (%p176) target = $region21
    $region20: #{tpu_custom_call.1} parent=1 // pred_region
      %v179 = vld [vmem:[#allocation2] sm:$0xff]
      %v180 = vld [vmem:[#allocation2 + $0x8] sm:$0xff]
      %v181 = vld [vmem:[#allocation2 + $0x10] sm:$0xff]
      %v182 = vld [vmem:[#allocation2 + $0x18] sm:$0xff]
      %v183 = vld [vmem:[#allocation2 + $0x20] sm:$0xff]
      %v184 = vld [vmem:[#allocation2 + $0x28] sm:$0xff]
      %v185 = vld [vmem:[#allocation2 + $0x30] sm:$0xff]
      %v186 = vld [vmem:[#allocation2 + $0x38] sm:$0xff]
      %v187 = vld [vmem:[%s2] sm:$0x1]
      %v189 = vlaneseq
      %v190 = vshrl.u32 %v189, 7
      %v191 = vsub.s32 0, %v190
      %v192 = vrot.slane %v187, %v191
      %v194 = vadd.f32 %v179, %v192
      %v195 = vadd.f32 %v180, %v192
      %v196 = vadd.f32 %v181, %v192
      %v197 = vadd.f32 %v182, %v192
      %v198 = vadd.f32 %v183, %v192
      %v199 = vadd.f32 %v184, %v192
      %v200 = vadd.f32 %v185, %v192
      %v201 = vadd.f32 %v186, %v192
      %v202 = vpack.c.bf16 %v195, %v194
      %v203 = vpack.c.bf16 %v197, %v196
      %v204 = vpack.c.bf16 %v199, %v198
      %v205 = vpack.c.bf16 %v201, %v200
      %v210 = vunpack.c.l.b16 %v202
      %v211 = vunpack.c.h.b16 %v202
      %v212 = vunpack.c.l.b16 %v203
      %v213 = vunpack.c.h.b16 %v203
      %v214 = vunpack.c.l.b16 %v204
      %v215 = vunpack.c.h.b16 %v204
      %v216 = vunpack.c.l.b16 %v205
      %v217 = vunpack.c.h.b16 %v205
      %v218 = vpack.c.b16 %v210, %v210
      %v219 = vpack.c.b16 %v211, %v211
      %v220 = vpack.c.b16 %v212, %v212
      %v221 = vpack.c.b16 %v213, %v213
      %v222 = vpack.c.b16 %v214, %v214
      %v223 = vpack.c.b16 %v215, %v215
      %v224 = vpack.c.b16 %v216, %v216
      %v225 = vpack.c.b16 %v217, %v217
      %vm234 = vcmask 781312
      %235 = vst.msk [vmem:[#allocation3] sm:$0xf] %vm234, %v218
      %236 = vst.msk [vmem:[#allocation3 + $0x4] sm:$0xf] %vm234, %v219
      %237 = vst.msk [vmem:[#allocation3 + $0x8] sm:$0xf] %vm234, %v220
      %238 = vst.msk [vmem:[#allocation3 + $0xc] sm:$0xf] %vm234, %v221
      %239 = vst.msk [vmem:[#allocation3 + $0x10] sm:$0xf] %vm234, %v222
      %240 = vst.msk [vmem:[#allocation3 + $0x14] sm:$0xf] %vm234, %v223
      %241 = vst.msk [vmem:[#allocation3 + $0x18] sm:$0xf] %vm234, %v224
      %242 = vst.msk [vmem:[#allocation3 + $0x1c] sm:$0xf] %vm234, %v225
    $region21: #{tpu_custom_call.1} parent=1 // pred_fallthru
      _
    // Predicated region
    $region22: #{tpu_custom_call.1} parent=1 // pred_check
      _
    $region23: #{tpu_custom_call.1} parent=1 // pred_check_branch
      %244 = sbr.rel (0) target = $region25
    $region24: #{tpu_custom_call.1} parent=1 // pred_region
      %s246 = ssub.s32 512, 512
      %247 = vsyncadd [#allocation4], %s246
      %s248 = sshll.u32 [#allocation3], 4
      %s249 = int_to_ptr.vmem [resolvable:$true] %s248
      %254 = dma.vmem_to_hbm [thread:$0]  %s249, 512, %s3, [#allocation4], 64, 64, 4
    $region25: #{tpu_custom_call.1} parent=1 // pred_fallthru
      _
    // Predicated region
    $region26: #{tpu_custom_call.1} parent=1 // pred_check
      _
    $region27: #{tpu_custom_call.1} parent=1 // pred_check_branch
      %256 = sbr.rel (0) target = $region29
    $region28: #{tpu_custom_call.1} parent=1 // pred_region
      %257 = dma.done [#allocation4], 512
    $region29: #{tpu_custom_call.1} parent=1 // pred_fallthru
      _
    %258 = vsyncpa [#allocation4], 1

</llo_original>
